<compile_context>
chip_gen: v7x
topology: tpu7x:2x2x1
jax: 0.10.0
libtpu: 0.0.40
codegen_flags: <defaults>
</compile_context>

<pallas_src>
import jax
import jax.numpy as jnp
from jax.experimental import pallas as pl
from jax.experimental.pallas import tpu as pltpu


def _stylemod_kernel(scale_ref, shift_ref, x_ref, o_ref):
    # scale_ref : (1, C, 1)        f32, per-batch (style_scale + 1)
    # shift_ref : (1, C, 1)        f32, per-batch style_shift
    # x_ref     : (1, C, TILE_HW)  current spatial tile of this batch element
    # o_ref     : (1, C, TILE_HW)
    x = x_ref[...].astype(jnp.float32)
    o_ref[...] = (x * scale_ref[...] + shift_ref[...]).astype(o_ref.dtype)


def _pick_tile_hw(hw_pad, c, x_itemsize, batch, *,
                  total_budget_bytes, target_block_bytes=8 << 20):
    """Largest multiple-of-128 divisor of hw_pad whose (sublane-padded)
    double-buffered in+out blocks plus the scale/shift buffers fit the budget.
    Prefers >= 2 total grid steps when batch == 1 (v7x megacore)."""
    # Sublane packing: 8 rows for 32-bit, 16 for 16-bit, 32 for 8-bit dtypes.
    sub_x = max(8, 32 // x_itemsize)
    c_x = -(-c // sub_x) * sub_x          # padded C for x / out blocks
    c_s = -(-c // 8) * 8                  # padded C for f32 scale/shift blocks
    # scale + shift: 2 arrays x double buffer x (c_s sublanes, 1->128 lanes) f32
    ss_bytes = 2 * 2 * c_s * 128 * 4

    def fits(t):
        block = c_x * t * x_itemsize
        # x in + out, each double-buffered
        return (block <= target_block_bytes
                and 4 * block + ss_bytes <= total_budget_bytes)

    divisors = [t for t in range(128, hw_pad + 1, 128) if hw_pad % t == 0]
    good = [t for t in divisors if fits(t)]
    if not good:
        return 128  # last-resort lane-dense tile
    if batch == 1:
        multi_step = [t for t in good if hw_pad // t >= 2]
        if multi_step:
            return max(multi_step)
    return max(good)


def style_mod(x, latent, weight, bias, *, w_mul, b_mul,
              small_bypass_bytes=2 << 20):
    """x: (B, C, H, W) NCHW, latent: (B, L), weight: (2C, L), bias: (2C,)."""
    B, C, H, W = x.shape
    HW = H * W

    # --- style GEMM hoisted to plain XLA (tiny, MXU-unfriendly shape) -------
    style = (latent.astype(jnp.float32)
             @ (weight.astype(jnp.float32) * float(w_mul)).T
             + bias.astype(jnp.float32) * float(b_mul))            # (B, 2C) f32
    scale = (style[:, :C] + 1.0).reshape(B, C, 1)                  # +1 folded, f32
    shift = style[:, C:].reshape(B, C, 1)                          # f32

    itemsize = jnp.dtype(x.dtype).itemsize

    # --- tiny-tensor bypass: fused XLA beats pallas launch overhead ---------
    if B * C * HW * itemsize < small_bypass_bytes:
        y = x.astype(jnp.float32) * scale[..., None] + shift[..., None]
        return y.astype(x.dtype)

    # --- lane-dense spatially tiled modulation stream ------------------------
    x_flat = x.reshape(B, C, HW)
    hw_pad = -(-HW // 128) * 128
    if hw_pad != HW:
        # Pad in the wrapper so every output block is a full 128-lane store.
        x_flat = jnp.pad(x_flat, ((0, 0), (0, 0), (0, hw_pad - HW)))

    # Generation-aware but conservative VMEM budgeting.
    try:
        info = pltpu.get_tpu_info()
        vmem_cap = int(getattr(info, "vmem_capacity_bytes", 64 << 20))
    except Exception:  # e.g. not queryable at trace time
        vmem_cap = 64 << 20
    vmem_limit = int(min(32 << 20, vmem_cap // 2))   # safe on v5e/v6e/v7x
    total_budget = (vmem_limit * 3) // 4             # headroom below the limit

    tile_hw = _pick_tile_hw(hw_pad, C, itemsize, B,
                            total_budget_bytes=total_budget)
    grid = (B, hw_pad // tile_hw)

    out_flat = pl.pallas_call(
        _stylemod_kernel,
        out_shape=jax.ShapeDtypeStruct((B, C, hw_pad), x.dtype),
        grid=grid,
        in_specs=[
            pl.BlockSpec((1, C, 1), lambda b, t: (b, 0, 0)),        # scale+1
            pl.BlockSpec((1, C, 1), lambda b, t: (b, 0, 0)),        # shift
            pl.BlockSpec((1, C, tile_hw), lambda b, t: (b, 0, t)),  # x tile
        ],
        out_specs=pl.BlockSpec((1, C, tile_hw), lambda b, t: (b, 0, t)),
        input_output_aliases={2: 0},   # output reuses the x buffer
        cost_estimate=pl.CostEstimate(
            flops=2 * B * C * hw_pad,
            transcendentals=0,
            bytes_accessed=2 * B * C * hw_pad * itemsize + 2 * B * C * 4),
        compiler_params=pltpu.CompilerParams(
            dimension_semantics=("parallel", "parallel"),
            vmem_limit_bytes=vmem_limit),
    )(scale, shift, x_flat)

    if hw_pad != HW:
        out_flat = out_flat[:, :, :HW]
    return out_flat.reshape(B, C, H, W)


def _style_mod_ref(x, latent, weight, bias, *, w_mul, b_mul):
    """Pure-JAX reference mirroring the PyTorch forward exactly."""
    B, C = x.shape[0], x.shape[1]
    style = latent @ (weight * w_mul).T + bias * b_mul              # (B, 2C)
    style = style.reshape(B, 2, C, 1, 1)
    return x * (style[:, 0] + 1.0) + style[:, 1]


def _make_equalized_linear_params(key, latent_size, channels,
                                  use_wscale=True, gain=1.0, lrmul=1.0):
    he_std = gain * latent_size ** (-0.5)
    if use_wscale:
        init_std = 1.0 / lrmul
        w_mul = he_std * lrmul
    else:
        init_std = he_std / lrmul
        w_mul = lrmul
    weight = jax.random.normal(key, (2 * channels, latent_size),
                               dtype=jnp.float32) * init_std
    bias = jnp.zeros((2 * channels,), dtype=jnp.float32)
    return weight, bias, w_mul, lrmul


if __name__ == "__main__":
    key = jax.random.PRNGKey(0)

    # --- Test 1: small canonical shape, force the Pallas path ---------------
    B, C, H, W = 2, 4, 16, 16
    latent_size = 8
    k1, k2, k3, key = jax.random.split(key, 4)
    x = jax.random.normal(k1, (B, C, H, W), dtype=jnp.float32)
    latent = jax.random.normal(k2, (B, latent_size), dtype=jnp.float32)
    weight, bias, w_mul, b_mul = _make_equalized_linear_params(k3, latent_size, C)

    out = style_mod(x, latent, weight, bias, w_mul=w_mul, b_mul=b_mul,
                    small_bypass_bytes=0)          # force pallas_call
    out = jax.block_until_ready(out)
    ref = _style_mod_ref(x, latent, weight, bias, w_mul=w_mul, b_mul=b_mul)
    assert out.shape == (B, C, H, W)
    assert jnp.allclose(out, ref, atol=1e-5, rtol=1e-5), "mismatch (test 1)"

    # --- Test 2: HW not a multiple of 128 (exercises the padded path) -------
    B2, C2, H2, W2 = 2, 8, 10, 10
    k1, k2, k3, key = jax.random.split(key, 4)
    x2 = jax.random.normal(k1, (B2, C2, H2, W2), dtype=jnp.float32)
    latent2 = jax.random.normal(k2, (B2, latent_size), dtype=jnp.float32)
    weight2, bias2, w_mul2, b_mul2 = _make_equalized_linear_params(
        k3, latent_size, C2)

    out2 = style_mod(x2, latent2, weight2, bias2, w_mul=w_mul2, b_mul=b_mul2,
                     small_bypass_bytes=0)         # force pallas_call
    out2 = jax.block_until_ready(out2)
    ref2 = _style_mod_ref(x2, latent2, weight2, bias2,
                          w_mul=w_mul2, b_mul=b_mul2)
    assert out2.shape == (B2, C2, H2, W2)
    assert jnp.allclose(out2, ref2, atol=1e-5, rtol=1e-5), "mismatch (test 2)"

    print("KERNEL_OK")
</pallas_src>

<mosaic_0001>
module attributes {stable_mosaic.version = 11 : i64} {
  func.func @_stylemod_kernel(%arg0: i32, %arg1: i32, %arg2: memref<1x4x1xf32, #tpu.memory_space<vmem>>, %arg3: memref<1x4x1xf32, #tpu.memory_space<vmem>>, %arg4: memref<1x4x256xf32, #tpu.memory_space<vmem>>, %arg5: memref<1x4x256xf32, #tpu.memory_space<vmem>>) attributes {dimension_semantics = [#tpu.dimension_semantics<parallel>, #tpu.dimension_semantics<parallel>], iteration_bounds = array<i64: 2, 1>, scalar_prefetch = 0 : i64, scratch_operands = 0 : i64, tpu.core_type = #tpu.core_type<tc>, window_params = [{transform_indices = @transform_0, window_bounds = array<i64: 1, 4, 1>}, {transform_indices = @transform_1, window_bounds = array<i64: 1, 4, 1>}, {transform_indices = @transform_2, window_bounds = array<i64: 1, 4, 256>}, {transform_indices = @transform_3, window_bounds = array<i64: 1, 4, 256>}]} {
    %c0 = arith.constant 0 : index
    %c0_0 = arith.constant 0 : index
    %c0_1 = arith.constant 0 : index
    %0 = vector.load %arg4[%c0, %c0_0, %c0_1] : memref<1x4x256xf32, #tpu.memory_space<vmem>>, vector<1x4x256xf32>
    %c0_2 = arith.constant 0 : index
    %c0_3 = arith.constant 0 : index
    %c0_4 = arith.constant 0 : index
    %1 = vector.load %arg2[%c0_2, %c0_3, %c0_4] : memref<1x4x1xf32, #tpu.memory_space<vmem>>, vector<1x4x1xf32>
    %2 = vector.broadcast %1 : vector<1x4x1xf32> to vector<1x4x256xf32>
    %3 = arith.mulf %0, %2 : vector<1x4x256xf32>
    %c0_5 = arith.constant 0 : index
    %c0_6 = arith.constant 0 : index
    %c0_7 = arith.constant 0 : index
    %4 = vector.load %arg3[%c0_5, %c0_6, %c0_7] : memref<1x4x1xf32, #tpu.memory_space<vmem>>, vector<1x4x1xf32>
    %5 = vector.broadcast %4 : vector<1x4x1xf32> to vector<1x4x256xf32>
    %6 = arith.addf %3, %5 : vector<1x4x256xf32>
    %c0_8 = arith.constant 0 : index
    %c0_9 = arith.constant 0 : index
    %c0_10 = arith.constant 0 : index
    %7 = vector.load %arg5[%c0_8, %c0_9, %c0_10] : memref<1x4x256xf32, #tpu.memory_space<vmem>>, vector<1x4x256xf32>
    tpu.vector_store %arg5[%c0_8, %c0_9, %c0_10], %6 {strides = array<i32>} : memref<1x4x256xf32, #tpu.memory_space<vmem>>, vector<1x4x256xf32>,
    return
  }
  func.func @transform_0(%arg0: i32, %arg1: i32) -> (i32, i32, i32) {
    %c0_i32 = arith.constant 0 : i32
    %c0_i32_0 = arith.constant 0 : i32
    %c0_i32_1 = arith.constant 0 : i32
    return %arg0, %c0_i32, %c0_i32_0 : i32, i32, i32
  }
  func.func @transform_1(%arg0: i32, %arg1: i32) -> (i32, i32, i32) {
    %c0_i32 = arith.constant 0 : i32
    %c0_i32_0 = arith.constant 0 : i32
    %c0_i32_1 = arith.constant 0 : i32
    return %arg0, %c0_i32, %c0_i32_0 : i32, i32, i32
  }
  func.func @transform_2(%arg0: i32, %arg1: i32) -> (i32, i32, i32) {
    %c0_i32 = arith.constant 0 : i32
    %c0_i32_0 = arith.constant 0 : i32
    return %arg0, %c0_i32, %arg1 : i32, i32, i32
  }
  func.func @transform_3(%arg0: i32, %arg1: i32) -> (i32, i32, i32) {
    %c0_i32 = arith.constant 0 : i32
    %c0_i32_0 = arith.constant 0 : i32
    return %arg0, %c0_i32, %arg1 : i32, i32, i32
  }
}

</mosaic_0001>

<llo_original>
// kernel: tpu_custom_call.1
$region0: #{tpu_custom_call.1}
  #allocation0 [shape = 'u32[]', space=smem, size = 0x4, offset = 0x4, fixed_abs, tag = 'smem constant byte address 0x4 - core index']
  #allocation1 [shape = 'u32[144,128]{1,0:T(1,128)}', space=vmem, size = 0x12000, scoped, tag = 'internal scratch']
  %s0 = inlined_call_operand.vmem [shape: f32[2,4,1], index: 0, kind: input, shape index: {}]
  %s1 = inlined_call_operand.vmem [shape: f32[2,4,1], index: 1, kind: input, shape index: {}]
  %s2 = inlined_call_operand.hbm [shape: f32[2,4,256], index: 2, kind: input, shape index: {}, may-alias: {2,3}]
  %s3 = inlined_call_operand.hbm [shape: f32[2,4,256], index: 3, kind: output, shape index: {}, may-alias: {2,3}]
  %s4 = sld [smem:[#allocation0]]
  $region49: #{tpu_custom_call.1} parent=0
    _
  %s6 = ssub.s32 1, %s4
  %s7 = scalar_select 0, %s6, %s4
  $region1: #{tpu_custom_call.1} parent=0
    #allocation2 [shape = 'u8[8192]{0}', space=vmem, size = 0x2000, scoped, tag = 'input window, operand 2']
    #allocation3 [shape = 's32[2]{0}', space=sflag, size = 0x8, scoped, tag = 'scoped memory for tpu_custom_call.1']
    #allocation4 [shape = 's32[2]{0}', space=sflag, size = 0x8, scoped, tag = 'scoped memory for tpu_custom_call.1']
    #allocation5 [shape = 'u8[8192]{0}', space=vmem, size = 0x2000, scoped, tag = 'output window, operand 0']
    %8 = vsyncpa [#allocation3], 0
    %s9 = scalar_lea.sflag [#allocation3], 1
    %10 = vsyncpa %s9, 0
    %11 = vsyncpa [#allocation4], 0
    %s12 = scalar_lea.sflag [#allocation4], 1
    %13 = vsyncpa %s12, 0
    loop: start=0, step=1, limit=4
    $region2: #{tpu_custom_call.1} parent=1 // loop_pre_header
      _
    $region3: #{tpu_custom_call.1} parent=1 // loop_header
      %s15 = sphi 0, %s19
      %p16 = scmp.ge.s32.totalorder %s15, 4
      %s22 = sphi 0, %s34
      %s23 = sphi 0, %s30
      %s24 = sphi 0, %s22
      %s25 = sphi 0, %s23
      %s26 = sphi 0, %s24
      %s27 = sphi 0, %s25
      %s37 = sphi 0, %s39
      %s40 = sphi 0, %s37
      %s41 = sphi 0, %s40
      %s57 = sphi 0, %s41
      %s63 = sphi 0, %s65
      %s66 = sphi 0, %s63
      %s67 = sphi 0, %s66
      %s83 = sphi 0, %s67
      %s91 = sphi 0, %s93
      %s94 = sphi 0, %s91
      %s95 = sphi 0, %s94
      %s111 = sphi 0, %s95
      %s119 = sphi 0, %s121
      %s122 = sphi 0, %s119
      %s123 = sphi 0, %s122
      %s139 = sphi 0, %s123
    $region4: #{tpu_custom_call.1} parent=1 // loop_header_branch
      %18 = sbr.rel (%p16) target = $region8
    $region5: #{tpu_custom_call.1} parent=1 // loop_body
      %s20 = ssub.s32 %s15, 1
      %s21 = ssub.s32 %s15, 2
      %s28 = sadd.s32 1, %s23
      %p29 = scmp.ge.s32.totalorder %s28, 1
      %s30 = scalar_select %p29, 0, %s28
      %s31 = sadd.s32 1, %s22
      %s32 = scalar_select %p29, %s31, %s22
      %p33 = scmp.ge.s32.totalorder %s32, 2
      %s34 = scalar_select %p33, 0, %s32
      %s35 = ssub.s32 %s22, %s34
      %p36 = scmp.eq.s32.totalorder %s35, 0
      %s38 = sadd.s32 %s37, 1
      %s39 = scalar_select %p36, %s37, %s38
      %p42 = pneg %p36
      %p43 = scmp.eq.s32.totalorder %s15, 1
      %p44 = por %p42, %p43
      %p45 = scmp.ne.s32.totalorder %s37, %s40
      %p46 = scmp.eq.s32.totalorder %s15, 0
      %p47 = por %p45, %p46
      %p48 = scmp.ne.s32.totalorder %s37, %s40
      %p49 = scmp.eq.s32.totalorder %s20, 1
      %p50 = por %p48, %p49
      %p51 = scmp.ne.s32.totalorder %s40, %s41
      %p52 = scmp.eq.s32.totalorder %s20, 0
      %p53 = por %p51, %p52
      %p54 = scmp.ne.s32.totalorder %s40, %s41
      %p55 = scmp.eq.s32.totalorder %s21, 1
      %p56 = por %p54, %p55
      %p58 = scmp.ne.s32.totalorder %s41, %s57
      %p59 = scmp.eq.s32.totalorder %s21, 0
      %p60 = por %p58, %p59
      %s61 = ssub.s32 %s22, %s34
      %p62 = scmp.eq.s32.totalorder %s61, 0
      %s64 = sadd.s32 %s63, 1
      %s65 = scalar_select %p62, %s63, %s64
      %p68 = pneg %p62
      %p69 = scmp.eq.s32.totalorder %s15, 1
      %p70 = por %p68, %p69
      %p71 = scmp.ne.s32.totalorder %s63, %s66
      %p72 = scmp.eq.s32.totalorder %s15, 0
      %p73 = por %p71, %p72
      %p74 = scmp.ne.s32.totalorder %s63, %s66
      %p75 = scmp.eq.s32.totalorder %s20, 1
      %p76 = por %p74, %p75
      %p77 = scmp.ne.s32.totalorder %s66, %s67
      %p78 = scmp.eq.s32.totalorder %s20, 0
      %p79 = por %p77, %p78
      %p80 = scmp.ne.s32.totalorder %s66, %s67
      %p81 = scmp.eq.s32.totalorder %s21, 1
      %p82 = por %p80, %p81
      %p84 = scmp.ne.s32.totalorder %s67, %s83
      %p85 = scmp.eq.s32.totalorder %s21, 0
      %p86 = por %p84, %p85
      %s87 = ssub.s32 %s22, %s34
      %s88 = ssub.s32 %s23, %s30
      %s89 = sor.u32 %s87, %s88
      %p90 = scmp.eq.s32.totalorder %s89, 0
      %s92 = sadd.s32 %s91, 1
      %s93 = scalar_select %p90, %s91, %s92
      %p96 = pneg %p90
      %p97 = scmp.eq.s32.totalorder %s15, 1
      %p98 = por %p96, %p97
      %p99 = scmp.ne.s32.totalorder %s91, %s94
      %p100 = scmp.eq.s32.totalorder %s15, 0
      %p101 = por %p99, %p100
      %p102 = scmp.ne.s32.totalorder %s91, %s94
      %p103 = scmp.eq.s32.totalorder %s20, 1
      %p104 = por %p102, %p103
      %p105 = scmp.ne.s32.totalorder %s94, %s95
      %p106 = scmp.eq.s32.totalorder %s20, 0
      %p107 = por %p105, %p106
      %p108 = scmp.ne.s32.totalorder %s94, %s95
      %p109 = scmp.eq.s32.totalorder %s21, 1
      %p110 = por %p108, %p109
      %p112 = scmp.ne.s32.totalorder %s95, %s111
      %p113 = scmp.eq.s32.totalorder %s21, 0
      %p114 = por %p112, %p113
      %s115 = ssub.s32 %s22, %s34
      %s116 = ssub.s32 %s23, %s30
      %s117 = sor.u32 %s115, %s116
      %p118 = scmp.eq.s32.totalorder %s117, 0
      %s120 = sadd.s32 %s119, 1
      %s121 = scalar_select %p118, %s119, %s120
      %p124 = pneg %p118
      %p125 = scmp.eq.s32.totalorder %s15, 1
      %p126 = por %p124, %p125
      %p127 = scmp.ne.s32.totalorder %s119, %s122
      %p128 = scmp.eq.s32.totalorder %s15, 0
      %p129 = por %p127, %p128
      %p130 = scmp.ne.s32.totalorder %s119, %s122
      %p131 = scmp.eq.s32.totalorder %s20, 1
      %p132 = por %p130, %p131
      %p133 = scmp.ne.s32.totalorder %s122, %s123
      %p134 = scmp.eq.s32.totalorder %s20, 0
      %p135 = por %p133, %p134
      %p136 = scmp.ne.s32.totalorder %s122, %s123
      %p137 = scmp.eq.s32.totalorder %s21, 1
      %p138 = por %p136, %p137
      %p140 = scmp.ne.s32.totalorder %s123, %s139
      %p141 = scmp.eq.s32.totalorder %s21, 0
      %p142 = por %p140, %p141
      %p143 = scmp.le.s32.totalorder 1, %s15
      %p144 = scmp.lt.s32.totalorder %s15, 3
      %p145 = pnand %p143, %p144
      %p146 = pneg %p145
      // Predicated region
      $region9: #{tpu_custom_call.1} parent=5 // pred_check
        _
      $region10: #{tpu_custom_call.1} parent=5 // pred_check_branch
        %148 = sbr.rel (%p145) target = $region12
      $region11: #{tpu_custom_call.1} parent=5 // pred_region
        %s149 = ssub.s32 %s15, 1
      $region12: #{tpu_custom_call.1} parent=5 // pred_fallthru
        _
      %p150 = scmp.lt.s32.totalorder %s15, 2
      // Predicated region
      $region13: #{tpu_custom_call.1} parent=5 // pred_check
        %p151 = pneg %p150
      $region14: #{tpu_custom_call.1} parent=5 // pred_check_branch
        %153 = sbr.rel (%p151) target = $region16
      $region15: #{tpu_custom_call.1} parent=5 // pred_region
        // Predicated region
        $region17: #{tpu_custom_call.1} parent=15 // pred_check
          %p154 = pneg %p47
        $region18: #{tpu_custom_call.1} parent=15 // pred_check_branch
          %156 = sbr.rel (%p154) target = $region20
        $region19: #{tpu_custom_call.1} parent=15 // pred_region
          %p157 = scmp.lt.s32.totalorder %s22, 1
          %s158 = scalar_select %p157, %s22, 1
          %s159 = smul.addr %s158, 4
          %s160 = scalar_lea.vmem %s0, %s159
        $region20: #{tpu_custom_call.1} parent=15 // pred_fallthru
          _
        // Predicated region
        $region21: #{tpu_custom_call.1} parent=15 // pred_check
          %p161 = pneg %p73
        $region22: #{tpu_custom_call.1} parent=15 // pred_check_branch
          %163 = sbr.rel (%p161) target = $region24
        $region23: #{tpu_custom_call.1} parent=15 // pred_region
          %p164 = scmp.lt.s32.totalorder %s22, 1
          %s165 = scalar_select %p164, %s22, 1
          %s166 = smul.addr %s165, 4
          %s167 = scalar_lea.vmem %s1, %s166
        $region24: #{tpu_custom_call.1} parent=15 // pred_fallthru
          _
        // Predicated region
        $region25: #{tpu_custom_call.1} parent=15 // pred_check
          %p168 = pneg %p101
        $region26: #{tpu_custom_call.1} parent=15 // pred_check_branch
          %170 = sbr.rel (%p168) target = $region28
        $region27: #{tpu_custom_call.1} parent=15 // pred_region
          %s171 = sand.u32 %s91, 1
          %s172 = scalar_lea.sflag [#allocation3], %s171
          %s173 = sand.u32 %s91, 1
          %s174 = smul.addr %s173, 8
          %s175 = scalar_lea.vmem [#allocation2], %s174
          %s176 = smul.u32 2, %s23
          %s178 = ssub.s32 128, 128
          %179 = vsyncadd %s172, %s178
          %s180 = smul.addr %s22, 2
          %s181 = sadd.s32 %s176, %s180
          %s182 = smul.addr %s181, 64
          %s183 = scalar_lea.hbm %s2, %s182
          %s185 = sshll.u32 %s175, 4
          %s186 = int_to_ptr.vmem [resolvable:$true] %s185
          %188 = dma.hbm_to_vmem [thread:$0]  %s183, 128, %s186, %s172
        $region28: #{tpu_custom_call.1} parent=15 // pred_fallthru
          _
      $region16: #{tpu_custom_call.1} parent=5 // pred_fallthru
        _
      %p189 = scmp.le.s32.totalorder 1, %s15
      %p190 = scmp.lt.s32.totalorder %s15, 3
      %p191 = pnand %p189, %p190
      %p192 = pneg %p191
      // Predicated region
      $region29: #{tpu_custom_call.1} parent=5 // pred_check
        _
      $region30: #{tpu_custom_call.1} parent=5 // pred_check_branch
        %194 = sbr.rel (%p191) target = $region32
      $region31: #{tpu_custom_call.1} parent=5 // pred_region
        %s195 = ssub.s32 %s15, 1
        %s196 = sand.u32 %s94, 1
        %s197 = scalar_lea.sflag [#allocation3], %s196
        %s198 = sand.u32 %s94, 1
        %s199 = smul.addr %s198, 8
        %s200 = scalar_lea.vmem [#allocation2], %s199
        // Predicated region
        $region33: #{tpu_custom_call.1} parent=31 // pred_check
          %p201 = pneg %p107
        $region34: #{tpu_custom_call.1} parent=31 // pred_check_branch
          %203 = sbr.rel (%p201) target = $region36
        $region35: #{tpu_custom_call.1} parent=31 // pred_region
          %204 = dma.done %s197, 128
        $region36: #{tpu_custom_call.1} parent=31 // pred_fallthru
          _
        %p205 = scmp.lt.s32.totalorder %s24, 1
        %s206 = scalar_select %p205, %s24, 1
        %s207 = smul.addr %s206, 4
        %s208 = scalar_lea.vmem %s0, %s207
        %p209 = pneg %p53
        %p210 = pneg %p50
        %p211 = scmp.lt.s32.totalorder %s24, 1
        %s212 = scalar_select %p211, %s24, 1
        %s213 = smul.addr %s212, 4
        %s214 = scalar_lea.vmem %s1, %s213
        %p215 = pneg %p79
        %p216 = pneg %p76
        %s217 = sand.u32 %s94, 1
        %s218 = scalar_lea.sflag [#allocation3], %s217
        %s219 = sand.u32 %s94, 1
        %s220 = smul.addr %s219, 8
        %s221 = scalar_lea.vmem [#allocation2], %s220
        %p222 = pneg %p107
        %p223 = pneg %p104
        %p224 = pneg %p135
        %p225 = pneg %p132
        %s226 = sand.u32 %s122, 1
        %s227 = scalar_lea.sflag [#allocation4], %s226
        %s228 = sand.u32 %s122, 1
        %s229 = smul.addr %s228, 8
        %s230 = scalar_lea.vmem [#allocation5], %s229
        %p231 = scmp.lt.s32.totalorder %s24, 1
        %s232 = scalar_select %p231, %s24, 1
        %s233 = smul.addr %s232, 4
        %s234 = scalar_lea.vmem %s0, %s233
        %p235 = scmp.lt.s32.totalorder %s24, 1
        %s236 = scalar_select %p235, %s24, 1
        %s237 = smul.addr %s236, 4
        %s238 = scalar_lea.vmem %s1, %s237
        %s239 = smul.u32 2, %s25
        %s240 = smul.u32 2, %s25
        %v241 = vld [vmem:[%s200] sm:$0xff]
        %v242 = vld [vmem:[%s234] sm:$0xf]
        %244 = vset.pattern.permute.xlu0 0
        %245 = vperm.xlu0 %244, %v242
        %v246 = vpop.permute.xlu0 %245
        %v248 = vunpack.c.l.s4 839922192
        %v249 = vunpack.c.0.s8 %v248
        %v250 = vlaneseq
        %v251 = vshrl.u32 %v250, 7
        %v252 = vsub.s32 %v249, %v251
        %v253 = vrot.slane %v246, %v252
        %v255 = vmul.f32 %v241, %v253
        %v256 = vld [vmem:[%s238] sm:$0xf]
        %258 = vset.pattern.permute.xlu0 0
        %259 = vperm.xlu0 %258, %v256
        %v260 = vpop.permute.xlu0 %259
        %v262 = vunpack.c.l.s4 839922192
        %v263 = vunpack.c.0.s8 %v262
        %v264 = vlaneseq
        %v265 = vshrl.u32 %v264, 7
        %v266 = vsub.s32 %v263, %v265
        %v267 = vrot.slane %v260, %v266
        %v269 = vadd.f32 %v255, %v267
        %270 = vst [vmem:[%s230] sm:$0xff] %v269
        %s271 = sand.u32 %s122, 1
        %s272 = scalar_lea.sflag [#allocation4], %s271
        %s273 = sand.u32 %s122, 1
        %s274 = smul.addr %s273, 8
        %s275 = scalar_lea.vmem [#allocation5], %s274
        // Predicated region
        $region37: #{tpu_custom_call.1} parent=31 // pred_check
          %p276 = pneg %p132
        $region38: #{tpu_custom_call.1} parent=31 // pred_check_branch
          %278 = sbr.rel (%p276) target = $region40
        $region39: #{tpu_custom_call.1} parent=31 // pred_region
          %s279 = smul.u32 2, %s25
          %s281 = ssub.s32 128, 128
          %282 = vsyncadd %s272, %s281
          %s283 = smul.addr %s24, 2
          %s284 = sadd.s32 %s279, %s283
          %s285 = smul.addr %s284, 64
          %s286 = scalar_lea.hbm %s3, %s285
          %s288 = sshll.u32 %s275, 4
          %s289 = int_to_ptr.vmem [resolvable:$true] %s288
          %291 = dma.vmem_to_hbm [thread:$0]  %s289, 128, %s286, %s272
        $region40: #{tpu_custom_call.1} parent=31 // pred_fallthru
          _
      $region32: #{tpu_custom_call.1} parent=5 // pred_fallthru
        _
      %p292 = scmp.le.s32.totalorder 2, %s15
      // Predicated region
      $region41: #{tpu_custom_call.1} parent=5 // pred_check
        %p293 = pneg %p292
      $region42: #{tpu_custom_call.1} parent=5 // pred_check_branch
        %295 = sbr.rel (%p293) target = $region44
      $region43: #{tpu_custom_call.1} parent=5 // pred_region
        %s296 = ssub.s32 %s15, 2
        // Predicated region
        $region45: #{tpu_custom_call.1} parent=43 // pred_check
          %p297 = pneg %p138
        $region46: #{tpu_custom_call.1} parent=43 // pred_check_branch
          %299 = sbr.rel (%p297) target = $region48
        $region47: #{tpu_custom_call.1} parent=43 // pred_region
          %s300 = sand.u32 %s123, 1
          %s301 = scalar_lea.sflag [#allocation4], %s300
          %s302 = sand.u32 %s123, 1
          %s303 = smul.addr %s302, 8
          %s304 = scalar_lea.vmem [#allocation5], %s303
          %305 = dma.done %s301, 128
        $region48: #{tpu_custom_call.1} parent=43 // pred_fallthru
          _
      $region44: #{tpu_custom_call.1} parent=5 // pred_fallthru
        _
    $region6: #{tpu_custom_call.1} parent=1 // loop_footer
      %s19 = sadd.s32 1, %s15
    $region7: #{tpu_custom_call.1} parent=1 // loop_footer_branch
      %14 = sbr.rel target = $region3
    $region8: #{tpu_custom_call.1} parent=1 // loop_exit
      _
    %306 = vsyncpa [#allocation3], 1
    %s307 = scalar_lea.sflag [#allocation3], 1
    %308 = vsyncpa %s307, 1
    %309 = vsyncpa [#allocation4], 1
    %s310 = scalar_lea.sflag [#allocation4], 1
    %311 = vsyncpa %s310, 1

</llo_original>
